<compile_context>
chip_gen: v7x
topology: tpu7x:2x2x1
jax: 0.10.0
libtpu: 0.0.40
codegen_flags: <defaults>
</compile_context>

<pallas_src>
import jax
import jax.numpy as jnp
from jax.experimental import pallas as pl
from jax.experimental.pallas import tpu as pltpu


def _round_up(x, m):
    return ((x + m - 1) // m) * m


def _choose_tiling(batch, tb):
    """Pick (tile_b, padded_b).

    tile_b is a multiple of 8 (f32 sublane) and divides padded_b; padding is zero for the
    common power-of-two replay batches.  For padded_b >= 512 we force >= 2 grid steps so the
    'parallel' batch axis engages both v7x TensorCores.
    """
    tb = max(8, (tb // 8) * 8)
    if batch % 8 == 0:
        padded_b = batch
        tile = min(tb, batch)
    else:
        padded_b = _round_up(batch, 8)
        tile = min(tb, padded_b)
    while padded_b % tile:
        tile -= 8
    if padded_b >= 512 and tile == padded_b:
        half = padded_b // 2
        tile = half - (half % 8)
        while padded_b % tile or tile % 8:
            tile -= 8
    return tile, padded_b


def qnetwork_kernel(x_ref, w1_ref, b1_ref, w2_ref, b2_ref, w3_ref, b3_ref, out_ref):
    """Fused forward for one batch tile: relu(x@W1+b1) -> relu(.@W2+b2) -> .@W3+b3."""
    x = x_ref[...].astype(jnp.bfloat16)  # cast in-kernel; state arrives as f32
    h1 = jnp.dot(x, w1_ref[...], preferred_element_type=jnp.float32) + b1_ref[...]
    h1 = jnp.maximum(h1, 0.0).astype(jnp.bfloat16)
    h2 = jnp.dot(h1, w2_ref[...], preferred_element_type=jnp.float32) + b2_ref[...]
    h2 = jnp.maximum(h2, 0.0).astype(jnp.bfloat16)
    out_ref[...] = (
        jnp.dot(h2, w3_ref[...], preferred_element_type=jnp.float32) + b3_ref[...]
    ).astype(out_ref.dtype)


def qnetwork_forward(state, params, action_size, *, tb=1024):
    """Batch-tiled fused MLP. state: (B, S) f32. Returns (B, action_size) f32."""
    w1, b1, w2, b2, w3, b3 = params
    B, S = state.shape
    assert w3.shape[1] == action_size

    tile_b, padded_b = _choose_tiling(B, tb)
    if padded_b != B:
        # Ragged batch: pad rows (garbage Q-values in the pad rows are sliced off below).
        state = jnp.pad(state, ((0, padded_b - B), (0, 0)))
    nb = padded_b // tile_b

    out = pl.pallas_call(
        qnetwork_kernel,
        out_shape=jax.ShapeDtypeStruct((padded_b, action_size), jnp.float32),
        grid_spec=pltpu.PrefetchScalarGridSpec(
            num_scalar_prefetch=0,
            grid=(nb,),
            in_specs=[
                pl.BlockSpec((tile_b, S), lambda i: (i, 0)),   # state tile (pipelined)
                pl.BlockSpec(w1.shape, lambda i: (0, 0)),      # weights/biases VMEM-resident
                pl.BlockSpec(b1.shape, lambda i: (0, 0)),
                pl.BlockSpec(w2.shape, lambda i: (0, 0)),
                pl.BlockSpec(b2.shape, lambda i: (0, 0)),
                pl.BlockSpec(w3.shape, lambda i: (0, 0)),
                pl.BlockSpec(b3.shape, lambda i: (0, 0)),
            ],
            out_specs=pl.BlockSpec((tile_b, action_size), lambda i: (i, 0)),
        ),
        compiler_params=pltpu.CompilerParams(
            dimension_semantics=("parallel",),
        ),
    )(state, w1, b1, w2, b2, w3, b3)

    if padded_b != B:
        out = out[:B]
    return out


def init_qnetwork_params(key, state_size, action_size, fc1_units=64, fc2_units=64):
    """torch.nn.Linear-style init: U(-1/sqrt(fan_in), +1/sqrt(fan_in)).

    Weights stored as (in, out) bf16; biases f32 with shape (1, out). No output padding.
    """
    def linear(key, fan_in, fan_out):
        kw, kb = jax.random.split(key)
        bound = 1.0 / jnp.sqrt(jnp.float32(fan_in))
        w = jax.random.uniform(kw, (fan_in, fan_out), jnp.float32, -bound, bound)
        b = jax.random.uniform(kb, (1, fan_out), jnp.float32, -bound, bound)
        return w, b

    k1, k2, k3 = jax.random.split(key, 3)
    w1, b1 = linear(k1, state_size, fc1_units)
    w2, b2 = linear(k2, fc1_units, fc2_units)
    w3, b3 = linear(k3, fc2_units, action_size)

    return (
        w1.astype(jnp.bfloat16), b1,
        w2.astype(jnp.bfloat16), b2,
        w3.astype(jnp.bfloat16), b3,
    )


def qnetwork_reference(state, params, action_size):
    """Pure-JAX reference mirroring the kernel's bf16-compute / f32-accumulate path."""
    w1, b1, w2, b2, w3, b3 = params
    x = state.astype(jnp.bfloat16)
    h1 = jnp.maximum(jnp.dot(x, w1, preferred_element_type=jnp.float32) + b1, 0.0)
    h1 = h1.astype(jnp.bfloat16)
    h2 = jnp.maximum(jnp.dot(h1, w2, preferred_element_type=jnp.float32) + b2, 0.0)
    h2 = h2.astype(jnp.bfloat16)
    return jnp.dot(h2, w3, preferred_element_type=jnp.float32) + b3


if __name__ == "__main__":
    key = jax.random.PRNGKey(0)
    k_params, k_s1, k_s2, k_s3 = jax.random.split(key, 4)

    state_size = 8
    action_size = 4
    fc1_units = 64
    fc2_units = 64

    params = init_qnetwork_params(k_params, state_size, action_size, fc1_units, fc2_units)

    # Small single-tile case (typical per-step act() call); no pad, no slice.
    batch = 8
    state = jax.random.normal(k_s1, (batch, state_size), jnp.float32)
    out = jax.block_until_ready(qnetwork_forward(state, params, action_size))
    ref = qnetwork_reference(state, params, action_size)
    assert out.shape == (batch, action_size), out.shape
    assert jnp.allclose(out, ref, atol=1e-3, rtol=1e-3), "mismatch vs reference (B=8)"

    # Multi-tile case: exercises the batch grid with resident weights and pipelined tiles.
    batch2 = 256
    state2 = jax.random.normal(k_s2, (batch2, state_size), jnp.float32)
    out2 = jax.block_until_ready(qnetwork_forward(state2, params, action_size, tb=128))
    ref2 = qnetwork_reference(state2, params, action_size)
    assert out2.shape == (batch2, action_size), out2.shape
    assert jnp.allclose(out2, ref2, atol=1e-3, rtol=1e-3), "mismatch vs reference (B=256)"

    # Ragged batch (not a multiple of 8): exercises the pad + row-slice fallback path.
    batch3 = 50
    state3 = jax.random.normal(k_s3, (batch3, state_size), jnp.float32)
    out3 = jax.block_until_ready(qnetwork_forward(state3, params, action_size))
    ref3 = qnetwork_reference(state3, params, action_size)
    assert out3.shape == (batch3, action_size), out3.shape
    assert jnp.allclose(out3, ref3, atol=1e-3, rtol=1e-3), "mismatch vs reference (B=50)"

    print("KERNEL_OK")
</pallas_src>

<mosaic_0001>
module attributes {stable_mosaic.version = 11 : i64} {
  func.func @qnetwork_kernel(%arg0: i32, %arg1: memref<8x8xf32, #tpu.memory_space<vmem>>, %arg2: memref<8x64xbf16, #tpu.memory_space<vmem>>, %arg3: memref<1x64xf32, #tpu.memory_space<vmem>>, %arg4: memref<64x64xbf16, #tpu.memory_space<vmem>>, %arg5: memref<1x64xf32, #tpu.memory_space<vmem>>, %arg6: memref<64x4xbf16, #tpu.memory_space<vmem>>, %arg7: memref<1x4xf32, #tpu.memory_space<vmem>>, %arg8: memref<8x4xf32, #tpu.memory_space<vmem>>) attributes {dimension_semantics = [#tpu.dimension_semantics<parallel>], iteration_bounds = array<i64: 1>, scalar_prefetch = 0 : i64, scratch_operands = 0 : i64, tpu.core_type = #tpu.core_type<tc>, window_params = [{transform_indices = @transform_0, window_bounds = array<i64: 8, 8>}, {pipeline_mode = #tpu.pipeline_mode<synchronous>, transform_indices = @transform_1, window_bounds = array<i64: 8, 64>}, {pipeline_mode = #tpu.pipeline_mode<synchronous>, transform_indices = @transform_2, window_bounds = array<i64: 1, 64>}, {pipeline_mode = #tpu.pipeline_mode<synchronous>, transform_indices = @transform_3, window_bounds = array<i64: 64, 64>}, {pipeline_mode = #tpu.pipeline_mode<synchronous>, transform_indices = @transform_4, window_bounds = array<i64: 1, 64>}, {pipeline_mode = #tpu.pipeline_mode<synchronous>, transform_indices = @transform_5, window_bounds = array<i64: 64, 4>}, {pipeline_mode = #tpu.pipeline_mode<synchronous>, transform_indices = @transform_6, window_bounds = array<i64: 1, 4>}, {transform_indices = @transform_7, window_bounds = array<i64: 8, 4>}]} {
    %c0 = arith.constant 0 : index
    %c0_0 = arith.constant 0 : index
    %0 = vector.load %arg1[%c0, %c0_0] : memref<8x8xf32, #tpu.memory_space<vmem>>, vector<8x8xf32>
    %1 = arith.truncf %0 : vector<8x8xf32> to vector<8x8xbf16>
    %c0_1 = arith.constant 0 : index
    %c0_2 = arith.constant 0 : index
    %2 = vector.load %arg2[%c0_1, %c0_2] : memref<8x64xbf16, #tpu.memory_space<vmem>>, vector<8x64xbf16>
    %cst = arith.constant dense<0.000000e+00> : vector<8x64xf32>
    %3 = tpu.matmul %1, %2, %cst {dimension_numbers = #tpu.dot_dimension_numbers<[1], [0], [0], [1], [0, 0, 1, 1], [], []>} : vector<8x8xbf16>, vector<8x64xbf16>, vector<8x64xf32> -> vector<8x64xf32>
    %c0_3 = arith.constant 0 : index
    %c0_4 = arith.constant 0 : index
    %4 = vector.load %arg3[%c0_3, %c0_4] : memref<1x64xf32, #tpu.memory_space<vmem>>, vector<1x64xf32>
    %5 = vector.broadcast %4 : vector<1x64xf32> to vector<8x64xf32>
    %6 = arith.addf %3, %5 : vector<8x64xf32>
    %cst_5 = arith.constant 0.000000e+00 : f32
    %7 = vector.broadcast %cst_5 : f32 to vector<8x64xf32>
    %8 = arith.maximumf %6, %7 : vector<8x64xf32>
    %9 = arith.truncf %8 : vector<8x64xf32> to vector<8x64xbf16>
    %c0_6 = arith.constant 0 : index
    %c0_7 = arith.constant 0 : index
    %10 = vector.load %arg4[%c0_6, %c0_7] : memref<64x64xbf16, #tpu.memory_space<vmem>>, vector<64x64xbf16>
    %cst_8 = arith.constant dense<0.000000e+00> : vector<8x64xf32>
    %11 = tpu.matmul %9, %10, %cst_8 {dimension_numbers = #tpu.dot_dimension_numbers<[1], [0], [0], [1], [0, 0, 1, 1], [], []>} : vector<8x64xbf16>, vector<64x64xbf16>, vector<8x64xf32> -> vector<8x64xf32>
    %c0_9 = arith.constant 0 : index
    %c0_10 = arith.constant 0 : index
    %12 = vector.load %arg5[%c0_9, %c0_10] : memref<1x64xf32, #tpu.memory_space<vmem>>, vector<1x64xf32>
    %13 = vector.broadcast %12 : vector<1x64xf32> to vector<8x64xf32>
    %14 = arith.addf %11, %13 : vector<8x64xf32>
    %cst_11 = arith.constant 0.000000e+00 : f32
    %15 = vector.broadcast %cst_11 : f32 to vector<8x64xf32>
    %16 = arith.maximumf %14, %15 : vector<8x64xf32>
    %17 = arith.truncf %16 : vector<8x64xf32> to vector<8x64xbf16>
    %c0_12 = arith.constant 0 : index
    %c0_13 = arith.constant 0 : index
    %18 = vector.load %arg6[%c0_12, %c0_13] : memref<64x4xbf16, #tpu.memory_space<vmem>>, vector<64x4xbf16>
    %cst_14 = arith.constant dense<0.000000e+00> : vector<8x4xf32>
    %19 = tpu.matmul %17, %18, %cst_14 {dimension_numbers = #tpu.dot_dimension_numbers<[1], [0], [0], [1], [0, 0, 1, 1], [], []>} : vector<8x64xbf16>, vector<64x4xbf16>, vector<8x4xf32> -> vector<8x4xf32>
    %c0_15 = arith.constant 0 : index
    %c0_16 = arith.constant 0 : index
    %20 = vector.load %arg7[%c0_15, %c0_16] : memref<1x4xf32, #tpu.memory_space<vmem>>, vector<1x4xf32>
    %21 = vector.broadcast %20 : vector<1x4xf32> to vector<8x4xf32>
    %22 = arith.addf %19, %21 : vector<8x4xf32>
    %c0_17 = arith.constant 0 : index
    %c0_18 = arith.constant 0 : index
    %23 = vector.load %arg8[%c0_17, %c0_18] : memref<8x4xf32, #tpu.memory_space<vmem>>, vector<8x4xf32>
    tpu.vector_store %arg8[%c0_17, %c0_18], %22 {strides = array<i32>} : memref<8x4xf32, #tpu.memory_space<vmem>>, vector<8x4xf32>,
    return
  }
  func.func @transform_0(%arg0: i32) -> (i32, i32) {
    %c0_i32 = arith.constant 0 : i32
    %c0_i32_0 = arith.constant 0 : i32
    return %arg0, %c0_i32 : i32, i32
  }
  func.func @transform_1(%arg0: i32) -> (i32, i32) {
    %c0_i32 = arith.constant 0 : i32
    %c0_i32_0 = arith.constant 0 : i32
    %c0_i32_1 = arith.constant 0 : i32
    return %c0_i32, %c0_i32_0 : i32, i32
  }
  func.func @transform_2(%arg0: i32) -> (i32, i32) {
    %c0_i32 = arith.constant 0 : i32
    %c0_i32_0 = arith.constant 0 : i32
    %c0_i32_1 = arith.constant 0 : i32
    return %c0_i32, %c0_i32_0 : i32, i32
  }
  func.func @transform_3(%arg0: i32) -> (i32, i32) {
    %c0_i32 = arith.constant 0 : i32
    %c0_i32_0 = arith.constant 0 : i32
    %c0_i32_1 = arith.constant 0 : i32
    return %c0_i32, %c0_i32_0 : i32, i32
  }
  func.func @transform_4(%arg0: i32) -> (i32, i32) {
    %c0_i32 = arith.constant 0 : i32
    %c0_i32_0 = arith.constant 0 : i32
    %c0_i32_1 = arith.constant 0 : i32
    return %c0_i32, %c0_i32_0 : i32, i32
  }
  func.func @transform_5(%arg0: i32) -> (i32, i32) {
    %c0_i32 = arith.constant 0 : i32
    %c0_i32_0 = arith.constant 0 : i32
    %c0_i32_1 = arith.constant 0 : i32
    return %c0_i32, %c0_i32_0 : i32, i32
  }
  func.func @transform_6(%arg0: i32) -> (i32, i32) {
    %c0_i32 = arith.constant 0 : i32
    %c0_i32_0 = arith.constant 0 : i32
    %c0_i32_1 = arith.constant 0 : i32
    return %c0_i32, %c0_i32_0 : i32, i32
  }
  func.func @transform_7(%arg0: i32) -> (i32, i32) {
    %c0_i32 = arith.constant 0 : i32
    %c0_i32_0 = arith.constant 0 : i32
    return %arg0, %c0_i32 : i32, i32
  }
}

</mosaic_0001>

<llo_original>
// kernel: tpu_custom_call.1
$region0: #{tpu_custom_call.1}
  #allocation0 [shape = 'u32[]', space=smem, size = 0x4, offset = 0x4, fixed_abs, tag = 'smem constant byte address 0x4 - core index']
  #allocation1 [shape = 'u32[144,128]{1,0:T(1,128)}', space=vmem, size = 0x12000, scoped, tag = 'internal scratch']
  %s0 = inlined_call_operand.vmem [shape: f32[8,8], index: 0, kind: input, shape index: {}]
  %s1 = inlined_call_operand.vmem [shape: bf16[8,64], index: 1, kind: input, shape index: {}]
  %s2 = inlined_call_operand.vmem [shape: f32[1,64], index: 2, kind: input, shape index: {}]
  %s3 = inlined_call_operand.vmem [shape: bf16[64,64], index: 3, kind: input, shape index: {}]
  %s4 = inlined_call_operand.vmem [shape: f32[1,64], index: 4, kind: input, shape index: {}]
  %s5 = inlined_call_operand.vmem [shape: bf16[64,4], index: 5, kind: input, shape index: {}]
  %s6 = inlined_call_operand.vmem [shape: f32[1,4], index: 6, kind: input, shape index: {}]
  %s7 = inlined_call_operand.vmem [shape: f32[8,4], index: 7, kind: output, shape index: {}]
  %s8 = sld [smem:[#allocation0]]
  $region38: #{tpu_custom_call.1} parent=0
    _
  %s10 = ssub.s32 1, %s8
  %s11 = scalar_select 0, %s10, %s8
  // Predicated region
  $region2: #{tpu_custom_call.1} parent=0 // pred_check
    _
  $region3: #{tpu_custom_call.1} parent=0 // pred_check_branch
    %13 = sbr.rel (0) target = $region5
  $region4: #{tpu_custom_call.1} parent=0 // pred_region
    _
  $region5: #{tpu_custom_call.1} parent=0 // pred_fallthru
    _
  // Predicated region
  $region6: #{tpu_custom_call.1} parent=0 // pred_check
    _
  $region7: #{tpu_custom_call.1} parent=0 // pred_check_branch
    %15 = sbr.rel (0) target = $region9
  $region8: #{tpu_custom_call.1} parent=0 // pred_region
    _
  $region9: #{tpu_custom_call.1} parent=0 // pred_fallthru
    _
  // Predicated region
  $region10: #{tpu_custom_call.1} parent=0 // pred_check
    _
  $region11: #{tpu_custom_call.1} parent=0 // pred_check_branch
    %17 = sbr.rel (0) target = $region13
  $region12: #{tpu_custom_call.1} parent=0 // pred_region
    _
  $region13: #{tpu_custom_call.1} parent=0 // pred_fallthru
    _
  // Predicated region
  $region14: #{tpu_custom_call.1} parent=0 // pred_check
    _
  $region15: #{tpu_custom_call.1} parent=0 // pred_check_branch
    %19 = sbr.rel (0) target = $region17
  $region16: #{tpu_custom_call.1} parent=0 // pred_region
    _
  $region17: #{tpu_custom_call.1} parent=0 // pred_fallthru
    _
  // Predicated region
  $region18: #{tpu_custom_call.1} parent=0 // pred_check
    _
  $region19: #{tpu_custom_call.1} parent=0 // pred_check_branch
    %21 = sbr.rel (0) target = $region21
  $region20: #{tpu_custom_call.1} parent=0 // pred_region
    _
  $region21: #{tpu_custom_call.1} parent=0 // pred_fallthru
    _
  // Predicated region
  $region22: #{tpu_custom_call.1} parent=0 // pred_check
    _
  $region23: #{tpu_custom_call.1} parent=0 // pred_check_branch
    %23 = sbr.rel (0) target = $region25
  $region24: #{tpu_custom_call.1} parent=0 // pred_region
    _
  $region25: #{tpu_custom_call.1} parent=0 // pred_fallthru
    _
  // Predicated region
  $region26: #{tpu_custom_call.1} parent=0 // pred_check
    _
  $region27: #{tpu_custom_call.1} parent=0 // pred_check_branch
    %25 = sbr.rel (0) target = $region29
  $region28: #{tpu_custom_call.1} parent=0 // pred_region
    _
  $region29: #{tpu_custom_call.1} parent=0 // pred_fallthru
    _
  %v27 = vld [vmem:[%s0] sm:$0xff]
  %v28 = vpack.c.bf16 %v27, %v27
  %v29 = vld [vmem:[%s1] sm:$0xf]
  %v30 = vld [vmem:[%s2] sm:$0x1]
  %v32 = vlaneseq
  %v33 = vshrl.u32 %v32, 7
  %v34 = vsub.s32 0, %v33
  %v35 = vrot.slane %v30, %v34
  %vm37 = vcmask 64512
  %v39 = vsel %vm37, %v28, 0
  %vm41 = vcmask 1043456
  %v43 = vsel %vm41, %v29, 0
  %45 = vmatprep.subr.bf16.mxu0 0
  %46 = vmatpush1.bf16.msra.mxu0 %v43
  %47 = vmatprep.subr.bf16.mxu0 0
  %48 = vmatpush1.bf16.msra.mxu0 0
  %49 = vmatprep.subr.bf16.mxu0 0
  %50 = vmatpush1.bf16.msra.mxu0 0
  %51 = vmatprep.subr.bf16.mxu0 0
  %52 = vmatpush1.bf16.msra.mxu0 0
  %53 = vmatprep.subr.bf16.mxu0 0
  %54 = vmatpush1.bf16.msra.mxu0 0
  %55 = vmatprep.subr.bf16.mxu0 0
  %56 = vmatpush1.bf16.msra.mxu0 0
  %57 = vmatprep.subr.bf16.mxu0 0
  %58 = vmatpush1.bf16.msra.mxu0 0
  %59 = vmatprep.subr.bf16.mxu0 0
  %60 = vmatpush1.bf16.msra.mxu0 0
  %61 = vmatprep.subr.bf16.mxu0 0
  %62 = vmatpush1.bf16.msra.mxu0 0
  %63 = vmatprep.subr.bf16.mxu0 0
  %64 = vmatpush1.bf16.msra.mxu0 0
  %65 = vmatprep.subr.bf16.mxu0 0
  %66 = vmatpush1.bf16.msra.mxu0 0
  %67 = vmatprep.subr.bf16.mxu0 0
  %68 = vmatpush1.bf16.msra.mxu0 0
  %69 = vmatprep.subr.bf16.mxu0 0
  %70 = vmatpush1.bf16.msra.mxu0 0
  %71 = vmatprep.subr.bf16.mxu0 0
  %72 = vmatpush1.bf16.msra.mxu0 0
  %73 = vmatprep.subr.bf16.mxu0 0
  %74 = vmatpush1.bf16.msra.mxu0 0
  %75 = vmatprep.subr.bf16.mxu0 0
  %76 = vmatpush1.bf16.msra.mxu0 0
  %77 = vmatprep.mubr.bf16.mxu0 0
  %78 = vmatmul.mubr.bf16.gmra.mrb[0].mxu0 %v39
  %v79 = vpop.f32.mrb[0].mxu0
  %v80 = vadd.f32 %v35, %v79
  %v81 = vpop.f32.mrb[0].mxu0
  %v82 = vpop.f32.mrb[0].mxu0
  %v83 = vpop.f32.mrb[0].mxu0
  %84 = vdwg.mxu0
  %v85 = vmax.f32 %v80, 0.0
  %v86 = vpack.c.bf16 %v85, %v85
  %v87 = vld [vmem:[%s3] sm:$0xf]
  %v88 = vld [vmem:[%s3 + $0x4] sm:$0xf]
  %v89 = vld [vmem:[%s3 + $0x8] sm:$0xf]
  %v90 = vld [vmem:[%s3 + $0xc] sm:$0xf]
  %v91 = vld [vmem:[%s3 + $0x10] sm:$0xf]
  %v92 = vld [vmem:[%s3 + $0x14] sm:$0xf]
  %v93 = vld [vmem:[%s3 + $0x18] sm:$0xf]
  %v94 = vld [vmem:[%s3 + $0x1c] sm:$0xf]
  %v95 = vld [vmem:[%s4] sm:$0x1]
  %v97 = vlaneseq
  %v98 = vshrl.u32 %v97, 7
  %v99 = vsub.s32 0, %v98
  %v100 = vrot.slane %v95, %v99
  %v110 = vunpack.c.l.b16 %v87
  %v111 = vunpack.c.l.b16 %v88
  %v112 = vunpack.c.l.b16 %v89
  %v113 = vunpack.c.l.b16 %v90
  %v114 = vunpack.c.l.b16 %v91
  %v115 = vunpack.c.l.b16 %v92
  %v116 = vunpack.c.l.b16 %v93
  %v117 = vunpack.c.l.b16 %v94
  %v118 = vpack.c.b16 %v111, %v110
  %v119 = vpack.c.b16 %v113, %v112
  %v120 = vpack.c.b16 %v115, %v114
  %v121 = vpack.c.b16 %v117, %v116
  %vm126 = vcmask 523264
  %v128 = vsel %vm126, %v86, 0
  %130 = vmatprep.subr.bf16.mxu0 0
  %131 = vmatpush1.bf16.msra.mxu0 %v118
  %132 = vmatprep.subr.bf16.mxu0 0
  %133 = vmatpush1.bf16.msra.mxu0 %v119
  %134 = vmatprep.subr.bf16.mxu0 0
  %135 = vmatpush1.bf16.msra.mxu0 %v120
  %136 = vmatprep.subr.bf16.mxu0 0
  %137 = vmatpush1.bf16.msra.mxu0 %v121
  %138 = vmatprep.subr.bf16.mxu0 0
  %139 = vmatpush1.bf16.msra.mxu0 0
  %140 = vmatprep.subr.bf16.mxu0 0
  %141 = vmatpush1.bf16.msra.mxu0 0
  %142 = vmatprep.subr.bf16.mxu0 0
  %143 = vmatpush1.bf16.msra.mxu0 0
  %144 = vmatprep.subr.bf16.mxu0 0
  %145 = vmatpush1.bf16.msra.mxu0 0
  %146 = vmatprep.subr.bf16.mxu0 0
  %147 = vmatpush1.bf16.msra.mxu0 0
  %148 = vmatprep.subr.bf16.mxu0 0
  %149 = vmatpush1.bf16.msra.mxu0 0
  %150 = vmatprep.subr.bf16.mxu0 0
  %151 = vmatpush1.bf16.msra.mxu0 0
  %152 = vmatprep.subr.bf16.mxu0 0
  %153 = vmatpush1.bf16.msra.mxu0 0
  %154 = vmatprep.subr.bf16.mxu0 0
  %155 = vmatpush1.bf16.msra.mxu0 0
  %156 = vmatprep.subr.bf16.mxu0 0
  %157 = vmatpush1.bf16.msra.mxu0 0
  %158 = vmatprep.subr.bf16.mxu0 0
  %159 = vmatpush1.bf16.msra.mxu0 0
  %160 = vmatprep.subr.bf16.mxu0 0
  %161 = vmatpush1.bf16.msra.mxu0 0
  %162 = vmatprep.mubr.bf16.mxu0 0
  %163 = vmatmul.mubr.bf16.gmra.mrb[0].mxu0 %v128
  %v164 = vpop.f32.mrb[0].mxu0
  %v165 = vadd.f32 %v100, %v164
  %v166 = vpop.f32.mrb[0].mxu0
  %v167 = vpop.f32.mrb[0].mxu0
  %v168 = vpop.f32.mrb[0].mxu0
  %169 = vdwg.mxu0
  %v170 = vmax.f32 %v165, 0.0
  %v171 = vpack.c.bf16 %v170, %v170
  %v172 = vld [vmem:[%s5] sm:$0xf]
  %v173 = vld [vmem:[%s5 + $0x4] sm:$0xf]
  %v174 = vld [vmem:[%s5 + $0x8] sm:$0xf]
  %v175 = vld [vmem:[%s5 + $0xc] sm:$0xf]
  %v176 = vld [vmem:[%s5 + $0x10] sm:$0xf]
  %v177 = vld [vmem:[%s5 + $0x14] sm:$0xf]
  %v178 = vld [vmem:[%s5 + $0x18] sm:$0xf]
  %v179 = vld [vmem:[%s5 + $0x1c] sm:$0xf]
  %v180 = vld [vmem:[%s6] sm:$0x1]
  %v182 = vlaneseq
  %v183 = vshrl.u32 %v182, 7
  %v184 = vsub.s32 0, %v183
  %v185 = vrot.slane %v180, %v184
  %v195 = vunpack.c.l.b16 %v172
  %v196 = vunpack.c.l.b16 %v173
  %v197 = vunpack.c.l.b16 %v174
  %v198 = vunpack.c.l.b16 %v175
  %v199 = vunpack.c.l.b16 %v176
  %v200 = vunpack.c.l.b16 %v177
  %v201 = vunpack.c.l.b16 %v178
  %v202 = vunpack.c.l.b16 %v179
  %v203 = vpack.c.b16 %v196, %v195
  %v204 = vpack.c.b16 %v198, %v197
  %v205 = vpack.c.b16 %v200, %v199
  %v206 = vpack.c.b16 %v202, %v201
  %v212 = vsel %vm126, %v171, 0
  %214 = vmatprep.subr.bf16.mxu0 0
  %215 = vmatpush1.bf16.msra.mxu0 %v203
  %216 = vmatprep.subr.bf16.mxu0 0
  %217 = vmatpush1.bf16.msra.mxu0 %v204
  %218 = vmatprep.subr.bf16.mxu0 0
  %219 = vmatpush1.bf16.msra.mxu0 %v205
  %220 = vmatprep.subr.bf16.mxu0 0
  %221 = vmatpush1.bf16.msra.mxu0 %v206
  %222 = vmatprep.subr.bf16.mxu0 0
  %223 = vmatpush1.bf16.msra.mxu0 0
  %224 = vmatprep.subr.bf16.mxu0 0
  %225 = vmatpush1.bf16.msra.mxu0 0
  %226 = vmatprep.subr.bf16.mxu0 0
  %227 = vmatpush1.bf16.msra.mxu0 0
  %228 = vmatprep.subr.bf16.mxu0 0
  %229 = vmatpush1.bf16.msra.mxu0 0
  %230 = vmatprep.subr.bf16.mxu0 0
  %231 = vmatpush1.bf16.msra.mxu0 0
  %232 = vmatprep.subr.bf16.mxu0 0
  %233 = vmatpush1.bf16.msra.mxu0 0
  %234 = vmatprep.subr.bf16.mxu0 0
  %235 = vmatpush1.bf16.msra.mxu0 0
  %236 = vmatprep.subr.bf16.mxu0 0
  %237 = vmatpush1.bf16.msra.mxu0 0
  %238 = vmatprep.subr.bf16.mxu0 0
  %239 = vmatpush1.bf16.msra.mxu0 0
  %240 = vmatprep.subr.bf16.mxu0 0
  %241 = vmatpush1.bf16.msra.mxu0 0
  %242 = vmatprep.subr.bf16.mxu0 0
  %243 = vmatpush1.bf16.msra.mxu0 0
  %244 = vmatprep.subr.bf16.mxu0 0
  %245 = vmatpush1.bf16.msra.mxu0 0
  %246 = vmatprep.mubr.bf16.mxu0 0
  %247 = vmatmul.mubr.bf16.gmra.mrb[0].mxu0 %v212
  %v248 = vpop.f32.mrb[0].mxu0
  %v249 = vadd.f32 %v185, %v248
  %v250 = vpop.f32.mrb[0].mxu0
  %v251 = vpop.f32.mrb[0].mxu0
  %v252 = vpop.f32.mrb[0].mxu0
  %253 = vdwg.mxu0
  %vm254 = vcmask 31744
  %255 = vst.msk [vmem:[%s7] sm:$0xff] %vm254, %v249
  // Predicated region
  $region30: #{tpu_custom_call.1} parent=0 // pred_check
    _
  $region31: #{tpu_custom_call.1} parent=0 // pred_check_branch
    %257 = sbr.rel (0) target = $region33
  $region32: #{tpu_custom_call.1} parent=0 // pred_region
    _
  $region33: #{tpu_custom_call.1} parent=0 // pred_fallthru
    _
  // Predicated region
  $region34: #{tpu_custom_call.1} parent=0 // pred_check
    _
  $region35: #{tpu_custom_call.1} parent=0 // pred_check_branch
    %259 = sbr.rel (0) target = $region37
  $region36: #{tpu_custom_call.1} parent=0 // pred_region
    _
  $region37: #{tpu_custom_call.1} parent=0 // pred_fallthru
    _

</llo_original>
